<compile_context>
chip_gen: v5e
topology: v5e:2x2
jax: 0.10.0
libtpu: 0.0.40
codegen_flags: <defaults>
</compile_context>

<pallas_src>
import functools

import jax
import jax.numpy as jnp
from jax.experimental import pallas as pl
from jax.experimental.pallas import tpu as pltpu


_TARGET_TILE_BYTES = 4 * 1024 * 1024   # padded input-tile budget per buffer
_VMEM_LIMIT_BYTES = 32 * 1024 * 1024   # fits v5e/v6e (128 MiB phys) and v7x (64 MiB phys)


def _round_up(x, m):
    return ((x + m - 1) // m) * m


def _sublane_multiple(itemsize):
    # Second-minor packing multiple: f32 -> 8, bf16 -> 16, int8/fp8 -> 32.
    return max(8, 32 // max(1, itemsize))


def _choose_tiles(B, T, E, itemsize, target_bytes=_TARGET_TILE_BYTES):
    """Pick (block_rows, block_t) so the *padded* VMEM footprint of one input
    tile is ~target_bytes and every block satisfies the (8, 128) constraint."""
    sub = _sublane_multiple(itemsize)
    lane_e = _round_up(E, 128)
    row_bytes = _round_up(T, sub) * lane_e * itemsize  # one full-T row, padded

    rows = max(1, target_bytes // row_bytes)
    if rows >= 8 or rows >= B:
        bb = min(B, rows)
        if bb < B:
            bb = max(8, (bb // 8) * 8)
        # Guarantee >=4 steps on the "parallel" row axis when the batch allows
        # it, so both v7x TensorCores stream concurrently (harmless on 1-TC
        # v5e/v6e: a single extra ~0.35us step boundary on a multi-MiB tile).
        if B >= 16:
            bb = min(bb, max(8, _round_up(pl.cdiv(B, 4), 8)))
        return min(bb, B), T

    # A single 8-row full-T slab would blow the budget -> tile T as well.
    bb = min(B, 8)
    t_rows = max(1, target_bytes // (bb * lane_e * itemsize))
    tt = max(sub, (t_rows // sub) * sub)
    if tt >= T:
        return bb, T
    # TODO(synk): if E alone is so large that an (8, sub, round_up(E,128)) tile
    # exceeds the budget, additionally tile E with another "arbitrary" axis.
    return bb, tt


def _seq_pool_kernel(len_ref, x_ref, o_ref, *, mode, eps, t_chunk, t_total):
    """One grid step pools a (Bb, Tt, E) chunk into the resident (Bb, E) output.

    len_ref: (Bb, 1) int32  valid lengths for this block of rows
    x_ref:   (Bb, Tt, E)    sequence values (input dtype, bf16 stays bf16)
    o_ref:   (Bb, E)  f32   pooled output; resident accumulator across the
                            T ("arbitrary") grid axis.
    """
    k = pl.program_id(1)
    last_k = pl.num_programs(1) - 1

    x = x_ref[...]                                   # (Bb, Tt, E) input dtype
    lens = len_ref[...]                              # (Bb, 1) int32
    bb, tt, _ = x.shape

    t_local = jax.lax.broadcasted_iota(jnp.int32, (bb, tt, 1), 1)
    t_global = t_local + k * t_chunk
    valid = t_global < lens.reshape(bb, 1, 1)        # (Bb, Tt, 1) bool

    if mode == "max":
        @pl.when(k == 0)
        def _init():
            o_ref[...] = jnp.full(o_ref.shape, -jnp.inf, dtype=o_ref.dtype)

        # Exact PyTorch semantics: masked (in-range) positions get x - 1e9 so
        # length==0 rows reproduce max(x) - 1e9.
        hist = jnp.where(valid, x, x - jnp.asarray(1e9, x.dtype))
        if t_total % t_chunk != 0:
            # Out-of-range (padded) T positions must never win the max.
            hist = jnp.where(t_global < t_total, hist,
                             jnp.asarray(-jnp.inf, x.dtype))
        chunk_max = jnp.max(hist, axis=1).astype(jnp.float32)   # (Bb, E)
        o_ref[...] = jnp.maximum(o_ref[...], chunk_max)
    else:
        @pl.when(k == 0)
        def _init():
            o_ref[...] = jnp.zeros_like(o_ref)

        # Mask in the input dtype; accumulate in f32 only at the reduction so
        # no full-slab f32 copy is kept live.
        masked = jnp.where(valid, x, jnp.zeros((), x.dtype))
        o_ref[...] += jnp.sum(masked, axis=1, dtype=jnp.float32)

        if mode == "mean":
            @pl.when(k == last_k)
            def _finalize():
                inv = pl.reciprocal(lens.astype(jnp.float32) + eps)  # (Bb, 1)
                o_ref[...] = o_ref[...] * inv


def sequence_pooling(seq_value, seq_len, mode="mean", eps=1e-8,
                     block_rows=None, block_t=None):
    """Pallas implementation of SequencePoolingLayer.forward (supports_masking=False).

    seq_value: (B, T, E) float32 or bfloat16
    seq_len:   (B, 1) (or (B,)) integer valid lengths
    returns:   (B, 1, E) float32
    """
    if mode not in ("sum", "mean", "max"):
        raise ValueError("parameter mode should in [sum, mean, max]")

    B, T, E = seq_value.shape
    seq_len = jnp.reshape(seq_len, (B, 1)).astype(jnp.int32)
    itemsize = jnp.dtype(seq_value.dtype).itemsize
    sub = _sublane_multiple(itemsize)

    Bb, Tt = _choose_tiles(B, T, E, itemsize)
    if block_rows is not None:
        Bb = min(block_rows, B)
        if Bb != B and Bb % 8 != 0:
            raise ValueError("block_rows must be a multiple of 8 or equal to B")
    if block_t is not None:
        Tt = min(block_t, T)
        if Tt != T and Tt % sub != 0:
            raise ValueError(f"block_t must be a multiple of {sub} or equal to T")

    grid = (pl.cdiv(B, Bb), pl.cdiv(T, Tt))
    kernel = functools.partial(_seq_pool_kernel, mode=mode, eps=eps,
                               t_chunk=Tt, t_total=T)

    cost = pl.CostEstimate(
        flops=2 * B * T * E,
        transcendentals=0,
        bytes_accessed=B * T * E * itemsize + B * E * 4 + B * 4,
    )

    out2d = pl.pallas_call(
        kernel,
        out_shape=jax.ShapeDtypeStruct((B, E), jnp.float32),
        grid_spec=pl.GridSpec(
            grid=grid,
            in_specs=[
                pl.BlockSpec((Bb, 1), lambda i, k: (i, 0)),       # lengths
                pl.BlockSpec((Bb, Tt, E), lambda i, k: (i, k, 0)),  # values
            ],
            out_specs=pl.BlockSpec((Bb, E), lambda i, k: (i, 0)),   # resident acc
        ),
        compiler_params=pltpu.CompilerParams(
            dimension_semantics=("parallel", "arbitrary"),
            vmem_limit_bytes=_VMEM_LIMIT_BYTES,
        ),
        cost_estimate=cost,
    )(seq_len, seq_value)

    # Free layout plumbing outside the kernel: (B, E) -> (B, 1, E).
    return out2d[:, None, :]


def _reference(seq_value, seq_len, mode, eps=1e-8):
    """Plain-JAX reference mirroring the PyTorch forward."""
    B, T, E = seq_value.shape
    x = seq_value.astype(jnp.float32)
    seq_len = jnp.reshape(seq_len, (B, 1)).astype(jnp.int32)
    row = jnp.arange(T)[None, :]                       # (1, T)
    mask = (row < seq_len).astype(jnp.float32)         # (B, T)
    mask = jnp.repeat(mask[:, :, None], E, axis=2)     # (B, T, E)
    if mode == "max":
        hist = x - (1.0 - mask) * 1e9
        return jnp.max(hist, axis=1, keepdims=True)
    hist = jnp.sum(x * mask, axis=1, keepdims=False)
    if mode == "mean":
        hist = hist / (seq_len.astype(jnp.float32) + eps)
    return hist[:, None, :]


if __name__ == "__main__":
    key = jax.random.PRNGKey(0)
    ok = True

    # Case 1: small shapes consistent with the module (single block).
    B, T, E = 2, 8, 32
    k1, k2, key = jax.random.split(key, 3)
    seq_value = jax.random.normal(k1, (B, T, E), dtype=jnp.float32)
    seq_len = jax.random.randint(k2, (B, 1), minval=1, maxval=T + 1, dtype=jnp.int32)
    for mode in ("sum", "mean", "max"):
        out = jax.block_until_ready(sequence_pooling(seq_value, seq_len, mode=mode))
        ref = _reference(seq_value, seq_len, mode)
        if out.shape != (B, 1, E) or not jnp.allclose(out, ref, atol=1e-5, rtol=1e-5):
            ok = False

    # Case 2: multi-block rows (parallel axis with several steps).
    B2, T2, E2 = 24, 8, 32
    k3, k4, key = jax.random.split(key, 3)
    seq_value2 = jax.random.normal(k3, (B2, T2, E2), dtype=jnp.float32)
    seq_len2 = jax.random.randint(k4, (B2, 1), minval=1, maxval=T2 + 1, dtype=jnp.int32)
    for mode in ("sum", "mean", "max"):
        out = jax.block_until_ready(
            sequence_pooling(seq_value2, seq_len2, mode=mode, block_rows=8)
        )
        ref = _reference(seq_value2, seq_len2, mode)
        if out.shape != (B2, 1, E2) or not jnp.allclose(out, ref, atol=1e-5, rtol=1e-5):
            ok = False

    # Case 3: T-tiling path with a partial last chunk (arbitrary axis + resident
    # output accumulator, pad-safe max).
    B3, T3, E3 = 16, 20, 32
    k5, k6, key = jax.random.split(key, 3)
    seq_value3 = jax.random.normal(k5, (B3, T3, E3), dtype=jnp.float32)
    seq_len3 = jax.random.randint(k6, (B3, 1), minval=1, maxval=T3 + 1, dtype=jnp.int32)
    for mode in ("sum", "mean", "max"):
        out = jax.block_until_ready(
            sequence_pooling(seq_value3, seq_len3, mode=mode, block_rows=8, block_t=8)
        )
        ref = _reference(seq_value3, seq_len3, mode)
        if out.shape != (B3, 1, E3) or not jnp.allclose(out, ref, atol=1e-5, rtol=1e-5):
            ok = False

    # Case 4: bf16 inputs stream as bf16 (half HBM traffic), f32 accumulation.
    seq_value_bf16 = seq_value2.astype(jnp.bfloat16)
    for mode in ("mean", "max"):
        out = jax.block_until_ready(
            sequence_pooling(seq_value_bf16, seq_len2, mode=mode)
        )
        ref = _reference(seq_value_bf16, seq_len2, mode)
        if out.shape != (B2, 1, E2) or not jnp.allclose(out, ref, atol=1e-4, rtol=1e-4):
            ok = False

    if ok:
        print("KERNEL_OK")
</pallas_src>

<mosaic_0001>
module attributes {stable_mosaic.version = 11 : i64} {
  func.func @_seq_pool_kernel(%arg0: i32, %arg1: i32, %arg2: memref<2x1xi32, #tpu.memory_space<vmem>>, %arg3: memref<2x8x32xf32, #tpu.memory_space<vmem>>, %arg4: memref<2x32xf32, #tpu.memory_space<vmem>>) attributes {dimension_semantics = [#tpu.dimension_semantics<parallel>, #tpu.dimension_semantics<arbitrary>], iteration_bounds = array<i64: 1, 1>, scalar_prefetch = 0 : i64, scratch_operands = 0 : i64, tpu.core_type = #tpu.core_type<tc>, window_params = [{transform_indices = @transform_0, window_bounds = array<i64: 2, 1>}, {transform_indices = @transform_1, window_bounds = array<i64: 2, 8, 32>}, {transform_indices = @transform_2, window_bounds = array<i64: 2, 32>}]} {
    %c0 = arith.constant 0 : index
    %c0_0 = arith.constant 0 : index
    %c0_1 = arith.constant 0 : index
    %0 = vector.load %arg3[%c0, %c0_0, %c0_1] : memref<2x8x32xf32, #tpu.memory_space<vmem>>, vector<2x8x32xf32>
    %c0_2 = arith.constant 0 : index
    %c0_3 = arith.constant 0 : index
    %1 = vector.load %arg2[%c0_2, %c0_3] : memref<2x1xi32, #tpu.memory_space<vmem>>, vector<2x1xi32>
    %2 = tpu.iota {dimensions = array<i32: 1>} : vector<2x8x1xi32>
    %c8_i32 = arith.constant 8 : i32
    %3 = arith.muli %arg1, %c8_i32 : i32
    %4 = vector.broadcast %3 : i32 to vector<2x8x1xi32>
    %5 = arith.addi %2, %4 : vector<2x8x1xi32>
    %6 = vector.shape_cast %1 : vector<2x1xi32> to vector<2x1x1xi32>
    %7 = vector.broadcast %6 : vector<2x1x1xi32> to vector<2x8x1xi32>
    %8 = arith.cmpi slt, %5, %7 : vector<2x8x1xi32>
    %c0_i32 = arith.constant 0 : i32
    %9 = arith.cmpi eq, %arg1, %c0_i32 : i32
    %10 = arith.extui %9 : i1 to i32
    %c0_i32_4 = arith.constant 0 : i32
    %11 = arith.cmpi ne, %10, %c0_i32_4 : i32
    scf.if %11 {
      %cst_10 = arith.constant 0.000000e+00 : f32
      %20 = vector.broadcast %cst_10 : f32 to vector<2x32xf32>
      %c0_11 = arith.constant 0 : index
      %c0_12 = arith.constant 0 : index
      %21 = vector.load %arg4[%c0_11, %c0_12] : memref<2x32xf32, #tpu.memory_space<vmem>>, vector<2x32xf32>
      tpu.vector_store %arg4[%c0_11, %c0_12], %20 {strides = array<i32>} : memref<2x32xf32, #tpu.memory_space<vmem>>, vector<2x32xf32>,
    } else {
    }
    %cst = arith.constant 0.000000e+00 : f32
    %12 = vector.shape_cast %8 : vector<2x8x1xi1> to vector<2x8x1xi1>
    %13 = vector.broadcast %12 : vector<2x8x1xi1> to vector<2x8x32xi1>
    %14 = vector.broadcast %cst : f32 to vector<2x8x32xf32>
    %15 = arith.select %13, %0, %14 : vector<2x8x32xi1>, vector<2x8x32xf32>
    %c0_5 = arith.constant 0 : index
    %c0_6 = arith.constant 0 : index
    %16 = vector.load %arg4[%c0_5, %c0_6] : memref<2x32xf32, #tpu.memory_space<vmem>>, vector<2x32xf32>
    %cst_7 = arith.constant dense<0.000000e+00> : vector<2x32xf32>
    %17 = vector.multi_reduction <add>, %15, %cst_7 [1] : vector<2x8x32xf32> to vector<2x32xf32>
    %18 = arith.addf %16, %17 : vector<2x32xf32>
    %c0_8 = arith.constant 0 : index
    %c0_9 = arith.constant 0 : index
    %19 = vector.load %arg4[%c0_8, %c0_9] : memref<2x32xf32, #tpu.memory_space<vmem>>, vector<2x32xf32>
    tpu.vector_store %arg4[%c0_8, %c0_9], %18 {strides = array<i32>} : memref<2x32xf32, #tpu.memory_space<vmem>>, vector<2x32xf32>,
    return
  }
  func.func @transform_0(%arg0: i32, %arg1: i32) -> (i32, i32) {
    %c0_i32 = arith.constant 0 : i32
    %c0_i32_0 = arith.constant 0 : i32
    return %arg0, %c0_i32 : i32, i32
  }
  func.func @transform_1(%arg0: i32, %arg1: i32) -> (i32, i32, i32) {
    %c0_i32 = arith.constant 0 : i32
    %c0_i32_0 = arith.constant 0 : i32
    return %arg0, %arg1, %c0_i32 : i32, i32, i32
  }
  func.func @transform_2(%arg0: i32, %arg1: i32) -> (i32, i32) {
    %c0_i32 = arith.constant 0 : i32
    %c0_i32_0 = arith.constant 0 : i32
    return %arg0, %c0_i32 : i32, i32
  }
}

</mosaic_0001>

<llo_original>
// kernel: tpu_custom_call.1
$region0: #{tpu_custom_call.1}
  #allocation0 [shape = 'u32[]', space=smem, size = 0x4, offset = 0x4, fixed_abs, tag = 'smem constant byte address 0x4 - core index']
  #allocation1 [shape = 'u32[72,128]{1,0:T(1,128)}', space=vmem, size = 0x9000, scoped, tag = 'internal scratch']
  %s0 = inlined_call_operand.vmem [shape: s32[2,1], index: 0, kind: input, shape index: {}]
  %s1 = inlined_call_operand.hbm [shape: f32[2,8,32], index: 1, kind: input, shape index: {}]
  %s2 = inlined_call_operand.hbm [shape: f32[2,32], index: 2, kind: output, shape index: {}]
  %s3 = sld [smem:[#allocation0]]
  $region26: #{tpu_custom_call.1} parent=0
    _
  %s5 = ssub.s32 1, %s3
  %s6 = scalar_select 0, %s5, %s3
  $region1: #{tpu_custom_call.1} parent=0
    #allocation2 [shape = 'u8[8192]{0}', space=vmem, size = 0x2000, scoped, tag = 'input window, operand 1, single buffered']
    #allocation3 [shape = 's32[1]{0}', space=sflag, size = 0x4, scoped, tag = 'scoped memory for tpu_custom_call.1']
    #allocation4 [shape = 's32[1]{0}', space=sflag, size = 0x4, scoped, tag = 'scoped memory for tpu_custom_call.1']
    #allocation5 [shape = 'u8[1024]{0}', space=vmem, size = 0x400, scoped, tag = 'output window, operand 0, single buffered']
    %7 = vsyncpa [#allocation3], 0
    %8 = vsyncpa [#allocation4], 0
    // Predicated region
    $region2: #{tpu_custom_call.1} parent=1 // pred_check
      _
    $region3: #{tpu_custom_call.1} parent=1 // pred_check_branch
      %10 = sbr.rel (0) target = $region5
    $region4: #{tpu_custom_call.1} parent=1 // pred_region
      _
    $region5: #{tpu_custom_call.1} parent=1 // pred_fallthru
      _
    // Predicated region
    $region6: #{tpu_custom_call.1} parent=1 // pred_check
      _
    $region7: #{tpu_custom_call.1} parent=1 // pred_check_branch
      %12 = sbr.rel (0) target = $region9
    $region8: #{tpu_custom_call.1} parent=1 // pred_region
      %14 = vsyncadd [#allocation3], 0
      %s15 = sshll.u32 %s1, 4
      %s16 = int_to_ptr.hbm [resolvable:$true] %s15
      %s17 = sshll.u32 [#allocation2], 4
      %s18 = int_to_ptr.vmem [resolvable:$true] %s17
      %23 = dma.hbm_to_vmem [thread:$0]  %s16, 256, %s18, [#allocation3], 128, 128, 8
    $region9: #{tpu_custom_call.1} parent=1 // pred_fallthru
      _
    // Predicated region
    $region10: #{tpu_custom_call.1} parent=1 // pred_check
      _
    $region11: #{tpu_custom_call.1} parent=1 // pred_check_branch
      %25 = sbr.rel (0) target = $region13
    $region12: #{tpu_custom_call.1} parent=1 // pred_region
      %27 = dma.done [#allocation3], 256
    $region13: #{tpu_custom_call.1} parent=1 // pred_fallthru
      _
    %v28 = vld [vmem:[#allocation2] sm:$0xff]
    %v29 = vld [vmem:[#allocation2 + $0x8] sm:$0xff]
    %v30 = vld [vmem:[%s0] sm:$0x3]
    %v31 = vlaneseq
    %v32 = vshrl.u32 %v31, 7
    %s33 = smul.u32 0, 8
    %v34 = vstv %s33
    %v35 = vadd.s32 %v32, %v34
    %v36 = vrot.slane %v30, 1
    %v37 = vperm.slane %v30, 0
    %v38 = vperm.slane %v36, 0
    %vm39 = vcmp.lt.s32.totalorder %v35, %v37
    %vm40 = vcmp.lt.s32.totalorder %v35, %v38
    %p41 = scmp.eq.s32.totalorder 0, 0
    // Predicated region
    $region14: #{tpu_custom_call.1} parent=1 // pred_check
      %p42 = pneg %p41
    $region15: #{tpu_custom_call.1} parent=1 // pred_check_branch
      %44 = sbr.rel (%p42) target = $region17
    $region16: #{tpu_custom_call.1} parent=1 // pred_region
      %vm45 = vcmask 254976
      %46 = vst.msk [vmem:[#allocation5] sm:$0x3] %vm45, 0.0
    $region17: #{tpu_custom_call.1} parent=1 // pred_fallthru
      _
    %v47 = vsel %vm39, 1, 0
    %v48 = vsel %vm40, 1, 0
    %49 = vset.pattern.permute.xlu0 0
    %50 = vperm.xlu0 %49, %v47
    %v51 = vpop.permute.xlu0 %50
    %52 = vset.pattern.permute.xlu0 0
    %53 = vperm.xlu0 %52, %v48
    %v54 = vpop.permute.xlu0 %53
    %vm55 = vcmp.eq.s32.totalorder %v51, 1
    %vm56 = vcmp.eq.s32.totalorder %v54, 1
    %v57 = vsel %vm55, %v28, 0.0
    %v58 = vsel %vm56, %v29, 0.0
    %v59 = vld [vmem:[#allocation5] sm:$0x3]
    %vm60 = vcmask 261120
    %v61 = vsel %vm60, %v57, 0.0
    %v62 = vrot.slane %v61, 4
    %v63 = vadd.f32 %v61, %v62
    %v64 = vrot.slane %v63, 2
    %v65 = vadd.f32 %v63, %v64
    %v66 = vrot.slane %v65, 1
    %v67 = vadd.f32 %v65, %v66
    %v68 = vsel %vm60, %v58, 0.0
    %v69 = vrot.slane %v68, 4
    %v70 = vadd.f32 %v68, %v69
    %v71 = vrot.slane %v70, 2
    %v72 = vadd.f32 %v70, %v71
    %v73 = vrot.slane %v72, 1
    %v74 = vadd.f32 %v72, %v73
    %vm77 = vcmask 1041409
    %v78 = vsel %vm77, %v74, %v67
    %v80 = vadd.f32 %v59, %v78
    %vm81 = vcmask 254976
    %82 = vst.msk [vmem:[#allocation5] sm:$0x3] %vm81, %v80
    // Predicated region
    $region18: #{tpu_custom_call.1} parent=1 // pred_check
      _
    $region19: #{tpu_custom_call.1} parent=1 // pred_check_branch
      %84 = sbr.rel (0) target = $region21
    $region20: #{tpu_custom_call.1} parent=1 // pred_region
      %86 = vsyncadd [#allocation4], 0
      %s88 = sshll.u32 [#allocation5], 4
      %s89 = int_to_ptr.vmem [resolvable:$true] %s88
      %s90 = sshll.u32 %s2, 4
      %s91 = int_to_ptr.hbm [resolvable:$true] %s90
      %93 = dma.vmem_to_hbm [thread:$0]  %s89, 32, %s91, [#allocation4]
    $region21: #{tpu_custom_call.1} parent=1 // pred_fallthru
      _
    // Predicated region
    $region22: #{tpu_custom_call.1} parent=1 // pred_check
      _
    $region23: #{tpu_custom_call.1} parent=1 // pred_check_branch
      %95 = sbr.rel (0) target = $region25
    $region24: #{tpu_custom_call.1} parent=1 // pred_region
      %97 = dma.done [#allocation4], 32
    $region25: #{tpu_custom_call.1} parent=1 // pred_fallthru
      _
    %98 = vsyncpa [#allocation3], 1
    %99 = vsyncpa [#allocation4], 1

</llo_original>
